<compile_context>
chip_gen: v6e
topology: v6e:2x2x1
jax: 0.10.0
libtpu: 0.0.40
codegen_flags: <defaults>
</compile_context>

<pallas_src>
import functools

import jax
import jax.numpy as jnp
from jax import lax
from jax.experimental import pallas as pl
from jax.experimental.pallas import tpu as pltpu


def _round_up(x, m):
    return (x + m - 1) // m * m


def _cdiv(a, b):
    return (a + b - 1) // b


def _attention_cell_kernel(bh_ref, prev_h_ref, prev_c_ref, onehot_ref,
                           i2h_w_ref, h2h_w_ref, h2h_b_ref, score_w_ref,
                           w_c_ref, w_e_ref, w_h_ref, lstm_b_ref,
                           out_ref, *, pad_cols):
    f32 = jnp.float32
    T, Bt, C = bh_ref.shape          # t-major encoder features for this tile
    H = prev_h_ref.shape[1]
    cdt = bh_ref.dtype               # matmul-operand dtype (bf16 or f32)

    bh3 = bh_ref[...]                # (T, Bt, C)
    prev_h = prev_h_ref[...]         # (Bt, H)   compute dtype
    prev_c = prev_c_ref[...]         # (Bt, H)   f32
    onehot = onehot_ref[...]         # (Bt, E)   compute dtype

    # --- additive attention ---------------------------------------------------
    # One MXU matmul over all T*Bt encoder rows (leading-dim collapse is a free
    # reshape: Bt is a multiple of the sublane tile).
    bh_proj = jnp.dot(bh3.reshape(T * Bt, C), i2h_w_ref[...],
                      preferred_element_type=f32).reshape(T, Bt, H)
    h_proj = (jnp.dot(prev_h, h2h_w_ref[...], preferred_element_type=f32)
              + h2h_b_ref[...])                                   # (Bt, H)
    e = jnp.tanh(bh_proj + h_proj[None, :, :])                    # (T, Bt, H) f32

    # score[b, t] = score_w . e[t, b, :]  (VPU mul + lane reduce), then one tiny
    # (T, Bt) -> (Bt, T) transpose so the softmax axis is the lane axis.
    score_tb = jnp.sum(e * score_w_ref[...], axis=-1)             # (T, Bt)
    score = score_tb.T                                            # (Bt, T)

    # softmax over encoder steps (lane axis)
    m = jnp.max(score, axis=-1, keepdims=True)
    p = jnp.exp(score - m)
    alpha = p / jnp.sum(p, axis=-1, keepdims=True)                # (Bt, T) f32

    # context[b, :] = sum_t alpha[b, t] * batch_h[b, t, :]
    # T is small and static: fully-unrolled VPU FMAs with static slices
    # (no MXU routing matmuls).
    ctx = jnp.zeros((Bt, C), f32)
    for t in range(T):
        ctx = ctx + alpha[:, t:t + 1] * bh3[t].astype(f32)        # (Bt, C)

    # --- LSTMCell: gate matmul split per operand (no lane-axis concat) --------
    gates = (jnp.dot(ctx.astype(cdt), w_c_ref[...], preferred_element_type=f32)
             + jnp.dot(onehot, w_e_ref[...], preferred_element_type=f32)
             + jnp.dot(prev_h, w_h_ref[...], preferred_element_type=f32)
             + lstm_b_ref[...])                                   # (Bt, 4H) f32

    i_g = jax.nn.sigmoid(gates[:, 0:H])
    f_g = jax.nn.sigmoid(gates[:, H:2 * H])
    g_g = jnp.tanh(gates[:, 2 * H:3 * H])
    o_g = jax.nn.sigmoid(gates[:, 3 * H:4 * H])

    c_new = f_g * prev_c + i_g * g_g
    h_new = o_g * jnp.tanh(c_new)

    # --- single lane-dense packed store: [h_new | c_new | alpha | zero-pad] ---
    pieces = [h_new, c_new, alpha]
    if pad_cols:
        pieces.append(jnp.zeros((Bt, pad_cols), f32))
    out_ref[...] = jnp.concatenate(pieces, axis=-1).astype(out_ref.dtype)


def attention_cell(prev_h, prev_c, batch_h, char_onehots, params, *,
                   b_tile=None, use_bf16=True, num_tensorcores=1):
    """Pallas implementation of AttentionCell.forward.

    Returns ((h_new, c_new), alpha) matching the PyTorch module
    (alpha has shape (B, T, 1)).
    """
    B, T, C = batch_h.shape
    H = prev_h.shape[1]
    E = char_onehots.shape[1]

    cdt = jnp.bfloat16 if use_bf16 else jnp.float32
    itemsize = jnp.dtype(cdt).itemsize
    row_align = 16 if use_bf16 else 8          # sublane tile (bf16 packs 2x)

    # --- batch-tile heuristic (VMEM-budgeted, TC-count aware) -----------------
    if b_tile is None:
        # Dominant VMEM term: the double-buffered (T, b_tile, C) batch_h tile.
        bh_budget = 12 << 20
        rows_cap = max(row_align,
                       (bh_budget // max(1, 2 * T * C * itemsize))
                       // row_align * row_align)
        b_tile = int(min(128, _round_up(B, row_align), rows_cap))
        if num_tensorcores > 1:
            # v7x: aim for a tile count that is a multiple of the TC count so
            # the "parallel" grid axis splits evenly across both cores.
            b_rows = _round_up(B, row_align)
            n_tiles = _round_up(_cdiv(b_rows, b_tile), num_tensorcores)
            b_tile = int(max(row_align,
                             min(b_tile,
                                 _round_up(_cdiv(b_rows, n_tiles), row_align))))
    b_tile = _round_up(b_tile, row_align)
    B_pad = _round_up(B, b_tile)
    num_tiles = B_pad // b_tile

    # --- input prep (plain-JAX glue) ------------------------------------------
    def pad_rows(x, dtype):
        x = x.astype(dtype)
        if x.shape[0] != B_pad:
            x = jnp.pad(x, [(0, B_pad - x.shape[0])] + [(0, 0)] * (x.ndim - 1))
        return x

    prev_h_p = pad_rows(prev_h, cdt)
    prev_c_p = pad_rows(prev_c, jnp.float32)
    onehot_p = pad_rows(char_onehots, cdt)
    # t-major encoder features: (T, B_pad, C) so each batch tile is one
    # contiguous (T, b_tile, C) block.
    bh_t = jnp.transpose(batch_h.astype(cdt), (1, 0, 2))          # (T, B, C)
    if B != B_pad:
        bh_t = jnp.pad(bh_t, ((0, 0), (0, B_pad - B), (0, 0)))

    # Weights: transpose to x @ W form, split LSTM input weight per operand,
    # merge the two LSTM biases.  Matmul operands in compute dtype, biases f32.
    i2h_w_t = params["i2h_w"].T.astype(cdt)                        # (C, H)
    h2h_w_t = params["h2h_w"].T.astype(cdt)                        # (H, H)
    h2h_b = params["h2h_b"].reshape(1, H).astype(jnp.float32)      # (1, H)
    score_w = params["score_w"].reshape(1, H).astype(jnp.float32)  # (1, H)
    w_ih_t = params["lstm_w_ih"].T                                 # (C+E, 4H)
    w_c = w_ih_t[:C].astype(cdt)                                   # (C, 4H)
    w_e = w_ih_t[C:].astype(cdt)                                   # (E, 4H)
    w_h = params["lstm_w_hh"].T.astype(cdt)                        # (H, 4H)
    lstm_b = (params["lstm_b_ih"]
              + params["lstm_b_hh"]).reshape(1, 4 * H).astype(jnp.float32)

    # Packed lane-dense output: [h_new(H) | c_new(H) | alpha(T) | pad] -> W lanes
    W = _round_up(2 * H + T, 128)
    pad_cols = W - (2 * H + T)

    in_specs = [
        pl.BlockSpec((T, b_tile, C), lambda i: (0, i, 0)),   # batch_h (t-major)
        pl.BlockSpec((b_tile, H), lambda i: (i, 0)),         # prev_h
        pl.BlockSpec((b_tile, H), lambda i: (i, 0)),         # prev_c
        pl.BlockSpec((b_tile, E), lambda i: (i, 0)),         # char_onehots
        pl.BlockSpec((C, H), lambda i: (0, 0)),              # i2h weight
        pl.BlockSpec((H, H), lambda i: (0, 0)),              # h2h weight
        pl.BlockSpec((1, H), lambda i: (0, 0)),              # h2h bias
        pl.BlockSpec((1, H), lambda i: (0, 0)),              # score weight
        pl.BlockSpec((C, 4 * H), lambda i: (0, 0)),          # gate W (context)
        pl.BlockSpec((E, 4 * H), lambda i: (0, 0)),          # gate W (onehot)
        pl.BlockSpec((H, 4 * H), lambda i: (0, 0)),          # gate W (prev_h)
        pl.BlockSpec((1, 4 * H), lambda i: (0, 0)),          # merged gate bias
    ]
    out_specs = pl.BlockSpec((b_tile, W), lambda i: (i, 0))
    out_shape = jax.ShapeDtypeStruct((B_pad, W), jnp.float32)

    # Explicit VMEM limit: double-buffered per-tile inputs/outputs + weights +
    # f32 intermediates headroom, clamped to [32 MiB, 64 MiB] (v7x physical).
    est = (2 * (T * b_tile * C + b_tile * (H + E)) * itemsize
           + 2 * b_tile * H * 4 + 2 * b_tile * W * 4
           + 2 * (C * H + H * H + (C + E + H) * 4 * H) * itemsize
           + 2 * (2 * H + 4 * H) * 4
           + 8 * T * b_tile * max(C, H) * 4)
    vmem_limit = int(min(max(2 * est, 32 << 20), 64 << 20))

    fn = pl.pallas_call(
        functools.partial(_attention_cell_kernel, pad_cols=pad_cols),
        grid=(num_tiles,),
        in_specs=in_specs,
        out_specs=out_specs,
        out_shape=out_shape,
        compiler_params=pltpu.CompilerParams(
            dimension_semantics=("parallel",),
            vmem_limit_bytes=vmem_limit),
    )
    packed = fn(bh_t, prev_h_p, prev_c_p, onehot_p,
                i2h_w_t, h2h_w_t, h2h_b, score_w,
                w_c, w_e, w_h, lstm_b)

    h_new = packed[:B, 0:H]
    c_new = packed[:B, H:2 * H]
    alpha = packed[:B, 2 * H:2 * H + T][:, :, None]
    return (h_new, c_new), alpha


def attention_cell_ref(prev_h, prev_c, batch_h, char_onehots, params):
    """Pure-JAX reference mirroring the PyTorch forward exactly."""
    bh_proj = batch_h @ params["i2h_w"].T                              # (B,T,H)
    h_proj = (prev_h @ params["h2h_w"].T + params["h2h_b"])[:, None]   # (B,1,H)
    score = jnp.tanh(bh_proj + h_proj) @ params["score_w"].T           # (B,T,1)
    alpha = jax.nn.softmax(score, axis=1)                              # (B,T,1)
    context = jnp.sum(alpha * batch_h, axis=1)                         # (B,C)
    concat = jnp.concatenate([context, char_onehots], axis=1)          # (B,C+E)
    gates = (concat @ params["lstm_w_ih"].T + params["lstm_b_ih"]
             + prev_h @ params["lstm_w_hh"].T + params["lstm_b_hh"])   # (B,4H)
    i, f, g, o = jnp.split(gates, 4, axis=1)
    c_new = jax.nn.sigmoid(f) * prev_c + jax.nn.sigmoid(i) * jnp.tanh(g)
    h_new = jax.nn.sigmoid(o) * jnp.tanh(c_new)
    return (h_new, c_new), alpha


if __name__ == "__main__":
    B, T = 2, 8                    # batch, num_encoder_step
    C, H, E = 32, 32, 16           # input_size, hidden_size, num_embeddings

    key = jax.random.PRNGKey(0)
    ks = jax.random.split(key, 12)

    params = {
        "i2h_w":     0.1 * jax.random.normal(ks[0], (H, C), jnp.float32),
        "h2h_w":     0.1 * jax.random.normal(ks[1], (H, H), jnp.float32),
        "h2h_b":     0.1 * jax.random.normal(ks[2], (H,), jnp.float32),
        "score_w":   0.1 * jax.random.normal(ks[3], (1, H), jnp.float32),
        "lstm_w_ih": 0.1 * jax.random.normal(ks[4], (4 * H, C + E), jnp.float32),
        "lstm_w_hh": 0.1 * jax.random.normal(ks[5], (4 * H, H), jnp.float32),
        "lstm_b_ih": 0.1 * jax.random.normal(ks[6], (4 * H,), jnp.float32),
        "lstm_b_hh": 0.1 * jax.random.normal(ks[7], (4 * H,), jnp.float32),
    }

    prev_h = jax.random.normal(ks[8], (B, H), jnp.float32)
    prev_c = jax.random.normal(ks[9], (B, H), jnp.float32)
    batch_h = jax.random.normal(ks[10], (B, T, C), jnp.float32)
    char_ids = jax.random.randint(ks[11], (B,), 0, E)
    char_onehots = jax.nn.one_hot(char_ids, E, dtype=jnp.float32)

    (h_ref, c_ref), a_ref = attention_cell_ref(prev_h, prev_c, batch_h,
                                               char_onehots, params)

    # Exact f32 path: tight tolerance.
    (h32, c32), a32 = attention_cell(prev_h, prev_c, batch_h, char_onehots,
                                     params, use_bf16=False)
    jax.block_until_ready((h32, c32, a32))
    assert jnp.allclose(h32, h_ref, atol=1e-5, rtol=1e-5)
    assert jnp.allclose(c32, c_ref, atol=1e-5, rtol=1e-5)
    assert jnp.allclose(a32, a_ref, atol=1e-5, rtol=1e-5)

    # Production path: bf16 matmul operands, f32 accumulation / pointwise.
    (h16, c16), a16 = attention_cell(prev_h, prev_c, batch_h, char_onehots,
                                     params, use_bf16=True)
    jax.block_until_ready((h16, c16, a16))
    assert jnp.allclose(h16, h_ref, atol=3e-2, rtol=3e-2)
    assert jnp.allclose(c16, c_ref, atol=3e-2, rtol=3e-2)
    assert jnp.allclose(a16, a_ref, atol=3e-2, rtol=3e-2)

    print("KERNEL_OK")
</pallas_src>

<mosaic_0001>
module attributes {stable_mosaic.version = 11 : i64} {
  func.func @_attention_cell_kernel(%arg0: i32, %arg1: memref<8x8x32xf32, #tpu.memory_space<vmem>>, %arg2: memref<8x32xf32, #tpu.memory_space<vmem>>, %arg3: memref<8x32xf32, #tpu.memory_space<vmem>>, %arg4: memref<8x16xf32, #tpu.memory_space<vmem>>, %arg5: memref<32x32xf32, #tpu.memory_space<vmem>>, %arg6: memref<32x32xf32, #tpu.memory_space<vmem>>, %arg7: memref<1x32xf32, #tpu.memory_space<vmem>>, %arg8: memref<1x32xf32, #tpu.memory_space<vmem>>, %arg9: memref<32x128xf32, #tpu.memory_space<vmem>>, %arg10: memref<16x128xf32, #tpu.memory_space<vmem>>, %arg11: memref<32x128xf32, #tpu.memory_space<vmem>>, %arg12: memref<1x128xf32, #tpu.memory_space<vmem>>, %arg13: memref<8x128xf32, #tpu.memory_space<vmem>>) attributes {dimension_semantics = [#tpu.dimension_semantics<parallel>], iteration_bounds = array<i64: 1>, scalar_prefetch = 0 : i64, scratch_operands = 0 : i64, tpu.core_type = #tpu.core_type<tc>, window_params = [{transform_indices = @transform_0, window_bounds = array<i64: 8, 8, 32>}, {transform_indices = @transform_1, window_bounds = array<i64: 8, 32>}, {transform_indices = @transform_2, window_bounds = array<i64: 8, 32>}, {transform_indices = @transform_3, window_bounds = array<i64: 8, 16>}, {pipeline_mode = #tpu.pipeline_mode<synchronous>, transform_indices = @transform_4, window_bounds = array<i64: 32, 32>}, {pipeline_mode = #tpu.pipeline_mode<synchronous>, transform_indices = @transform_5, window_bounds = array<i64: 32, 32>}, {pipeline_mode = #tpu.pipeline_mode<synchronous>, transform_indices = @transform_6, window_bounds = array<i64: 1, 32>}, {pipeline_mode = #tpu.pipeline_mode<synchronous>, transform_indices = @transform_7, window_bounds = array<i64: 1, 32>}, {pipeline_mode = #tpu.pipeline_mode<synchronous>, transform_indices = @transform_8, window_bounds = array<i64: 32, 128>}, {pipeline_mode = #tpu.pipeline_mode<synchronous>, transform_indices = @transform_9, window_bounds = array<i64: 16, 128>}, {pipeline_mode = #tpu.pipeline_mode<synchronous>, transform_indices = @transform_10, window_bounds = array<i64: 32, 128>}, {pipeline_mode = #tpu.pipeline_mode<synchronous>, transform_indices = @transform_11, window_bounds = array<i64: 1, 128>}, {transform_indices = @transform_12, window_bounds = array<i64: 8, 128>}]} {
    %c0 = arith.constant 0 : index
    %c0_0 = arith.constant 0 : index
    %c0_1 = arith.constant 0 : index
    %0 = vector.load %arg1[%c0, %c0_0, %c0_1] : memref<8x8x32xf32, #tpu.memory_space<vmem>>, vector<8x8x32xf32>
    %c0_2 = arith.constant 0 : index
    %c0_3 = arith.constant 0 : index
    %1 = vector.load %arg2[%c0_2, %c0_3] : memref<8x32xf32, #tpu.memory_space<vmem>>, vector<8x32xf32>
    %c0_4 = arith.constant 0 : index
    %c0_5 = arith.constant 0 : index
    %2 = vector.load %arg3[%c0_4, %c0_5] : memref<8x32xf32, #tpu.memory_space<vmem>>, vector<8x32xf32>
    %c0_6 = arith.constant 0 : index
    %c0_7 = arith.constant 0 : index
    %3 = vector.load %arg4[%c0_6, %c0_7] : memref<8x16xf32, #tpu.memory_space<vmem>>, vector<8x16xf32>
    %4 = vector.shape_cast %0 : vector<8x8x32xf32> to vector<64x32xf32>
    %c0_8 = arith.constant 0 : index
    %c0_9 = arith.constant 0 : index
    %5 = vector.load %arg5[%c0_8, %c0_9] : memref<32x32xf32, #tpu.memory_space<vmem>>, vector<32x32xf32>
    %cst = arith.constant dense<0.000000e+00> : vector<64x32xf32>
    %6 = tpu.matmul %4, %5, %cst {dimension_numbers = #tpu.dot_dimension_numbers<[1], [0], [0], [1], [0, 0, 1, 1], [], []>} : vector<64x32xf32>, vector<32x32xf32>, vector<64x32xf32> -> vector<64x32xf32>
    %7 = vector.shape_cast %6 : vector<64x32xf32> to vector<8x8x32xf32>
    %c0_10 = arith.constant 0 : index
    %c0_11 = arith.constant 0 : index
    %8 = vector.load %arg6[%c0_10, %c0_11] : memref<32x32xf32, #tpu.memory_space<vmem>>, vector<32x32xf32>
    %cst_12 = arith.constant dense<0.000000e+00> : vector<8x32xf32>
    %9 = tpu.matmul %1, %8, %cst_12 {dimension_numbers = #tpu.dot_dimension_numbers<[1], [0], [0], [1], [0, 0, 1, 1], [], []>} : vector<8x32xf32>, vector<32x32xf32>, vector<8x32xf32> -> vector<8x32xf32>
    %c0_13 = arith.constant 0 : index
    %c0_14 = arith.constant 0 : index
    %10 = vector.load %arg7[%c0_13, %c0_14] : memref<1x32xf32, #tpu.memory_space<vmem>>, vector<1x32xf32>
    %11 = vector.broadcast %10 : vector<1x32xf32> to vector<8x32xf32>
    %12 = arith.addf %9, %11 : vector<8x32xf32>
    %13 = vector.shape_cast %12 : vector<8x32xf32> to vector<1x8x32xf32>
    %14 = vector.broadcast %13 : vector<1x8x32xf32> to vector<8x8x32xf32>
    %15 = arith.addf %7, %14 : vector<8x8x32xf32>
    %16 = math.tanh %15 : vector<8x8x32xf32>
    %c0_15 = arith.constant 0 : index
    %c0_16 = arith.constant 0 : index
    %17 = vector.load %arg8[%c0_15, %c0_16] : memref<1x32xf32, #tpu.memory_space<vmem>>, vector<1x32xf32>
    %18 = vector.shape_cast %17 : vector<1x32xf32> to vector<1x1x32xf32>
    %19 = vector.broadcast %18 : vector<1x1x32xf32> to vector<8x8x32xf32>
    %20 = arith.mulf %16, %19 : vector<8x8x32xf32>
    %cst_17 = arith.constant dense<0.000000e+00> : vector<8x8xf32>
    %21 = vector.multi_reduction <add>, %20, %cst_17 [2] : vector<8x8x32xf32> to vector<8x8xf32>
    %22 = tpu.transpose %21, [1, 0] : vector<8x8xf32> -> vector<8x8xf32>
    %cst_18 = arith.constant dense<0xFF800000> : vector<8xf32>
    %23 = vector.multi_reduction <maximumf>, %22, %cst_18 [1] : vector<8x8xf32> to vector<8xf32>
    %24 = vector.shape_cast %23 : vector<8xf32> to vector<8x1xf32>
    %25 = vector.broadcast %24 : vector<8x1xf32> to vector<8x8xf32>
    %26 = arith.subf %22, %25 : vector<8x8xf32>
    %27 = math.exp %26 : vector<8x8xf32>
    %cst_19 = arith.constant dense<0.000000e+00> : vector<8xf32>
    %28 = vector.multi_reduction <add>, %27, %cst_19 [1] : vector<8x8xf32> to vector<8xf32>
    %29 = vector.shape_cast %28 : vector<8xf32> to vector<8x1xf32>
    %30 = vector.broadcast %29 : vector<8x1xf32> to vector<8x8xf32>
    %31 = arith.divf %27, %30 : vector<8x8xf32>
    %cst_20 = arith.constant 0.000000e+00 : f32
    %32 = vector.broadcast %cst_20 : f32 to vector<8x32xf32>
    %33 = vector.extract_strided_slice %31 {offsets = [0, 0], sizes = [8, 1], strides = [1, 1]} : vector<8x8xf32> to vector<8x1xf32>
    %34 = vector.extract_strided_slice %0 {offsets = [0, 0, 0], sizes = [1, 8, 32], strides = [1, 1, 1]} : vector<8x8x32xf32> to vector<1x8x32xf32>
    %35 = vector.shape_cast %34 : vector<1x8x32xf32> to vector<8x32xf32>
    %36 = vector.broadcast %33 : vector<8x1xf32> to vector<8x32xf32>
    %37 = arith.mulf %36, %35 : vector<8x32xf32>
    %38 = arith.addf %32, %37 : vector<8x32xf32>
    %39 = vector.extract_strided_slice %31 {offsets = [0, 1], sizes = [8, 1], strides = [1, 1]} : vector<8x8xf32> to vector<8x1xf32>
    %40 = vector.extract_strided_slice %0 {offsets = [1, 0, 0], sizes = [1, 8, 32], strides = [1, 1, 1]} : vector<8x8x32xf32> to vector<1x8x32xf32>
    %41 = vector.shape_cast %40 : vector<1x8x32xf32> to vector<8x32xf32>
    %42 = vector.broadcast %39 : vector<8x1xf32> to vector<8x32xf32>
    %43 = arith.mulf %42, %41 : vector<8x32xf32>
    %44 = arith.addf %38, %43 : vector<8x32xf32>
    %45 = vector.extract_strided_slice %31 {offsets = [0, 2], sizes = [8, 1], strides = [1, 1]} : vector<8x8xf32> to vector<8x1xf32>
    %46 = vector.extract_strided_slice %0 {offsets = [2, 0, 0], sizes = [1, 8, 32], strides = [1, 1, 1]} : vector<8x8x32xf32> to vector<1x8x32xf32>
    %47 = vector.shape_cast %46 : vector<1x8x32xf32> to vector<8x32xf32>
    %48 = vector.broadcast %45 : vector<8x1xf32> to vector<8x32xf32>
    %49 = arith.mulf %48, %47 : vector<8x32xf32>
    %50 = arith.addf %44, %49 : vector<8x32xf32>
    %51 = vector.extract_strided_slice %31 {offsets = [0, 3], sizes = [8, 1], strides = [1, 1]} : vector<8x8xf32> to vector<8x1xf32>
    %52 = vector.extract_strided_slice %0 {offsets = [3, 0, 0], sizes = [1, 8, 32], strides = [1, 1, 1]} : vector<8x8x32xf32> to vector<1x8x32xf32>
    %53 = vector.shape_cast %52 : vector<1x8x32xf32> to vector<8x32xf32>
    %54 = vector.broadcast %51 : vector<8x1xf32> to vector<8x32xf32>
    %55 = arith.mulf %54, %53 : vector<8x32xf32>
    %56 = arith.addf %50, %55 : vector<8x32xf32>
    %57 = vector.extract_strided_slice %31 {offsets = [0, 4], sizes = [8, 1], strides = [1, 1]} : vector<8x8xf32> to vector<8x1xf32>
    %58 = vector.extract_strided_slice %0 {offsets = [4, 0, 0], sizes = [1, 8, 32], strides = [1, 1, 1]} : vector<8x8x32xf32> to vector<1x8x32xf32>
    %59 = vector.shape_cast %58 : vector<1x8x32xf32> to vector<8x32xf32>
    %60 = vector.broadcast %57 : vector<8x1xf32> to vector<8x32xf32>
    %61 = arith.mulf %60, %59 : vector<8x32xf32>
    %62 = arith.addf %56, %61 : vector<8x32xf32>
    %63 = vector.extract_strided_slice %31 {offsets = [0, 5], sizes = [8, 1], strides = [1, 1]} : vector<8x8xf32> to vector<8x1xf32>
    %64 = vector.extract_strided_slice %0 {offsets = [5, 0, 0], sizes = [1, 8, 32], strides = [1, 1, 1]} : vector<8x8x32xf32> to vector<1x8x32xf32>
    %65 = vector.shape_cast %64 : vector<1x8x32xf32> to vector<8x32xf32>
    %66 = vector.broadcast %63 : vector<8x1xf32> to vector<8x32xf32>
    %67 = arith.mulf %66, %65 : vector<8x32xf32>
    %68 = arith.addf %62, %67 : vector<8x32xf32>
    %69 = vector.extract_strided_slice %31 {offsets = [0, 6], sizes = [8, 1], strides = [1, 1]} : vector<8x8xf32> to vector<8x1xf32>
    %70 = vector.extract_strided_slice %0 {offsets = [6, 0, 0], sizes = [1, 8, 32], strides = [1, 1, 1]} : vector<8x8x32xf32> to vector<1x8x32xf32>
    %71 = vector.shape_cast %70 : vector<1x8x32xf32> to vector<8x32xf32>
    %72 = vector.broadcast %69 : vector<8x1xf32> to vector<8x32xf32>
    %73 = arith.mulf %72, %71 : vector<8x32xf32>
    %74 = arith.addf %68, %73 : vector<8x32xf32>
    %75 = vector.extract_strided_slice %31 {offsets = [0, 7], sizes = [8, 1], strides = [1, 1]} : vector<8x8xf32> to vector<8x1xf32>
    %76 = vector.extract_strided_slice %0 {offsets = [7, 0, 0], sizes = [1, 8, 32], strides = [1, 1, 1]} : vector<8x8x32xf32> to vector<1x8x32xf32>
    %77 = vector.shape_cast %76 : vector<1x8x32xf32> to vector<8x32xf32>
    %78 = vector.broadcast %75 : vector<8x1xf32> to vector<8x32xf32>
    %79 = arith.mulf %78, %77 : vector<8x32xf32>
    %80 = arith.addf %74, %79 : vector<8x32xf32>
    %c0_21 = arith.constant 0 : index
    %c0_22 = arith.constant 0 : index
    %81 = vector.load %arg9[%c0_21, %c0_22] : memref<32x128xf32, #tpu.memory_space<vmem>>, vector<32x128xf32>
    %cst_23 = arith.constant dense<0.000000e+00> : vector<8x128xf32>
    %82 = tpu.matmul %80, %81, %cst_23 {dimension_numbers = #tpu.dot_dimension_numbers<[1], [0], [0], [1], [0, 0, 1, 1], [], []>} : vector<8x32xf32>, vector<32x128xf32>, vector<8x128xf32> -> vector<8x128xf32>
    %c0_24 = arith.constant 0 : index
    %c0_25 = arith.constant 0 : index
    %83 = vector.load %arg10[%c0_24, %c0_25] : memref<16x128xf32, #tpu.memory_space<vmem>>, vector<16x128xf32>
    %cst_26 = arith.constant dense<0.000000e+00> : vector<8x128xf32>
    %84 = tpu.matmul %3, %83, %cst_26 {dimension_numbers = #tpu.dot_dimension_numbers<[1], [0], [0], [1], [0, 0, 1, 1], [], []>} : vector<8x16xf32>, vector<16x128xf32>, vector<8x128xf32> -> vector<8x128xf32>
    %85 = arith.addf %82, %84 : vector<8x128xf32>
    %c0_27 = arith.constant 0 : index
    %c0_28 = arith.constant 0 : index
    %86 = vector.load %arg11[%c0_27, %c0_28] : memref<32x128xf32, #tpu.memory_space<vmem>>, vector<32x128xf32>
    %cst_29 = arith.constant dense<0.000000e+00> : vector<8x128xf32>
    %87 = tpu.matmul %1, %86, %cst_29 {dimension_numbers = #tpu.dot_dimension_numbers<[1], [0], [0], [1], [0, 0, 1, 1], [], []>} : vector<8x32xf32>, vector<32x128xf32>, vector<8x128xf32> -> vector<8x128xf32>
    %88 = arith.addf %85, %87 : vector<8x128xf32>
    %c0_30 = arith.constant 0 : index
    %c0_31 = arith.constant 0 : index
    %89 = vector.load %arg12[%c0_30, %c0_31] : memref<1x128xf32, #tpu.memory_space<vmem>>, vector<1x128xf32>
    %90 = vector.broadcast %89 : vector<1x128xf32> to vector<8x128xf32>
    %91 = arith.addf %88, %90 : vector<8x128xf32>
    %92 = vector.extract_strided_slice %91 {offsets = [0, 0], sizes = [8, 32], strides = [1, 1]} : vector<8x128xf32> to vector<8x32xf32>
    %93 = arith.negf %92 : vector<8x32xf32>
    %94 = math.exp %93 : vector<8x32xf32>
    %cst_32 = arith.constant 1.000000e+00 : f32
    %95 = vector.broadcast %cst_32 : f32 to vector<8x32xf32>
    %96 = arith.addf %95, %94 : vector<8x32xf32>
    %97 = arith.divf %95, %96 : vector<8x32xf32>
    %98 = vector.extract_strided_slice %91 {offsets = [0, 32], sizes = [8, 32], strides = [1, 1]} : vector<8x128xf32> to vector<8x32xf32>
    %99 = arith.negf %98 : vector<8x32xf32>
    %100 = math.exp %99 : vector<8x32xf32>
    %cst_33 = arith.constant 1.000000e+00 : f32
    %101 = vector.broadcast %cst_33 : f32 to vector<8x32xf32>
    %102 = arith.addf %101, %100 : vector<8x32xf32>
    %103 = arith.divf %101, %102 : vector<8x32xf32>
    %104 = vector.extract_strided_slice %91 {offsets = [0, 64], sizes = [8, 32], strides = [1, 1]} : vector<8x128xf32> to vector<8x32xf32>
    %105 = math.tanh %104 : vector<8x32xf32>
    %106 = vector.extract_strided_slice %91 {offsets = [0, 96], sizes = [8, 32], strides = [1, 1]} : vector<8x128xf32> to vector<8x32xf32>
    %107 = arith.negf %106 : vector<8x32xf32>
    %108 = math.exp %107 : vector<8x32xf32>
    %cst_34 = arith.constant 1.000000e+00 : f32
    %109 = vector.broadcast %cst_34 : f32 to vector<8x32xf32>
    %110 = arith.addf %109, %108 : vector<8x32xf32>
    %111 = arith.divf %109, %110 : vector<8x32xf32>
    %112 = arith.mulf %103, %2 : vector<8x32xf32>
    %113 = arith.mulf %97, %105 : vector<8x32xf32>
    %114 = arith.addf %112, %113 : vector<8x32xf32>
    %115 = math.tanh %114 : vector<8x32xf32>
    %116 = arith.mulf %111, %115 : vector<8x32xf32>
    %cst_35 = arith.constant 0.000000e+00 : f32
    %117 = vector.broadcast %cst_35 : f32 to vector<8x56xf32>
    %118 = tpu.concatenate %116, %114, %31, %117 in 1 : vector<8x32xf32>, vector<8x32xf32>, vector<8x8xf32>, vector<8x56xf32> -> vector<8x128xf32>
    %c0_36 = arith.constant 0 : index
    %c0_37 = arith.constant 0 : index
    %119 = vector.load %arg13[%c0_36, %c0_37] : memref<8x128xf32, #tpu.memory_space<vmem>>, vector<8x128xf32>
    tpu.vector_store %arg13[%c0_36, %c0_37], %118 {strides = array<i32>} : memref<8x128xf32, #tpu.memory_space<vmem>>, vector<8x128xf32>,
    return
  }
  func.func @transform_0(%arg0: i32) -> (i32, i32, i32) {
    %c0_i32 = arith.constant 0 : i32
    %c0_i32_0 = arith.constant 0 : i32
    %c0_i32_1 = arith.constant 0 : i32
    return %c0_i32, %arg0, %c0_i32_0 : i32, i32, i32
  }
  func.func @transform_1(%arg0: i32) -> (i32, i32) {
    %c0_i32 = arith.constant 0 : i32
    %c0_i32_0 = arith.constant 0 : i32
    return %arg0, %c0_i32 : i32, i32
  }
  func.func @transform_2(%arg0: i32) -> (i32, i32) {
    %c0_i32 = arith.constant 0 : i32
    %c0_i32_0 = arith.constant 0 : i32
    return %arg0, %c0_i32 : i32, i32
  }
  func.func @transform_3(%arg0: i32) -> (i32, i32) {
    %c0_i32 = arith.constant 0 : i32
    %c0_i32_0 = arith.constant 0 : i32
    return %arg0, %c0_i32 : i32, i32
  }
  func.func @transform_4(%arg0: i32) -> (i32, i32) {
    %c0_i32 = arith.constant 0 : i32
    %c0_i32_0 = arith.constant 0 : i32
    %c0_i32_1 = arith.constant 0 : i32
    return %c0_i32, %c0_i32_0 : i32, i32
  }
  func.func @transform_5(%arg0: i32) -> (i32, i32) {
    %c0_i32 = arith.constant 0 : i32
    %c0_i32_0 = arith.constant 0 : i32
    %c0_i32_1 = arith.constant 0 : i32
    return %c0_i32, %c0_i32_0 : i32, i32
  }
  func.func @transform_6(%arg0: i32) -> (i32, i32) {
    %c0_i32 = arith.constant 0 : i32
    %c0_i32_0 = arith.constant 0 : i32
    %c0_i32_1 = arith.constant 0 : i32
    return %c0_i32, %c0_i32_0 : i32, i32
  }
  func.func @transform_7(%arg0: i32) -> (i32, i32) {
    %c0_i32 = arith.constant 0 : i32
    %c0_i32_0 = arith.constant 0 : i32
    %c0_i32_1 = arith.constant 0 : i32
    return %c0_i32, %c0_i32_0 : i32, i32
  }
  func.func @transform_8(%arg0: i32) -> (i32, i32) {
    %c0_i32 = arith.constant 0 : i32
    %c0_i32_0 = arith.constant 0 : i32
    %c0_i32_1 = arith.constant 0 : i32
    return %c0_i32, %c0_i32_0 : i32, i32
  }
  func.func @transform_9(%arg0: i32) -> (i32, i32) {
    %c0_i32 = arith.constant 0 : i32
    %c0_i32_0 = arith.constant 0 : i32
    %c0_i32_1 = arith.constant 0 : i32
    return %c0_i32, %c0_i32_0 : i32, i32
  }
  func.func @transform_10(%arg0: i32) -> (i32, i32) {
    %c0_i32 = arith.constant 0 : i32
    %c0_i32_0 = arith.constant 0 : i32
    %c0_i32_1 = arith.constant 0 : i32
    return %c0_i32, %c0_i32_0 : i32, i32
  }
  func.func @transform_11(%arg0: i32) -> (i32, i32) {
    %c0_i32 = arith.constant 0 : i32
    %c0_i32_0 = arith.constant 0 : i32
    %c0_i32_1 = arith.constant 0 : i32
    return %c0_i32, %c0_i32_0 : i32, i32
  }
  func.func @transform_12(%arg0: i32) -> (i32, i32) {
    %c0_i32 = arith.constant 0 : i32
    %c0_i32_0 = arith.constant 0 : i32
    return %arg0, %c0_i32 : i32, i32
  }
}

</mosaic_0001>

<llo_original>
// kernel: tpu_custom_call.1
$region0: #{tpu_custom_call.1}
  #allocation0 [shape = 'u32[]', space=smem, size = 0x4, offset = 0x4, fixed_abs, tag = 'smem constant byte address 0x4 - core index']
  #allocation1 [shape = 'u32[144,128]{1,0:T(1,128)}', space=vmem, size = 0x12000, scoped, tag = 'internal scratch']
  %s0 = inlined_call_operand.hbm [shape: f32[8,8,32], index: 0, kind: input, shape index: {}]
  %s1 = inlined_call_operand.hbm [shape: f32[8,32], index: 1, kind: input, shape index: {}]
  %s2 = inlined_call_operand.hbm [shape: f32[8,32], index: 2, kind: input, shape index: {}]
  %s3 = inlined_call_operand.hbm [shape: f32[8,16], index: 3, kind: input, shape index: {}]
  %s4 = inlined_call_operand.hbm [shape: f32[32,32], index: 4, kind: input, shape index: {}]
  %s5 = inlined_call_operand.hbm [shape: f32[32,32], index: 5, kind: input, shape index: {}]
  %s6 = inlined_call_operand.hbm [shape: f32[1,32], index: 6, kind: input, shape index: {}]
  %s7 = inlined_call_operand.hbm [shape: f32[1,32], index: 7, kind: input, shape index: {}]
  %s8 = inlined_call_operand.hbm [shape: f32[32,128], index: 8, kind: input, shape index: {}]
  %s9 = inlined_call_operand.vmem [shape: f32[16,128], index: 9, kind: input, shape index: {}]
  %s10 = inlined_call_operand.hbm [shape: f32[32,128], index: 10, kind: input, shape index: {}]
  %s11 = inlined_call_operand.vmem [shape: f32[1,128], index: 11, kind: input, shape index: {}]
  %s12 = inlined_call_operand.hbm [shape: f32[8,128], index: 12, kind: output, shape index: {}]
  %s13 = sld [smem:[#allocation0]]
  $region98: #{tpu_custom_call.1} parent=0
    _
  %s15 = ssub.s32 1, %s13
  %s16 = scalar_select 0, %s15, %s13
  $region1: #{tpu_custom_call.1} parent=0
    #allocation2 [shape = 'u8[32768]{0}', space=vmem, size = 0x8000, scoped, tag = 'input window, operand 0, single buffered']
    #allocation3 [shape = 's32[1]{0}', space=sflag, size = 0x4, scoped, tag = 'scoped memory for tpu_custom_call.1']
    #allocation4 [shape = 's32[1]{0}', space=sflag, size = 0x4, scoped, tag = 'scoped memory for tpu_custom_call.1']
    #allocation5 [shape = 'u8[4096]{0}', space=vmem, size = 0x1000, scoped, tag = 'input window, operand 1, single buffered']
    #allocation6 [shape = 's32[1]{0}', space=sflag, size = 0x4, scoped, tag = 'scoped memory for tpu_custom_call.1']
    #allocation7 [shape = 'u8[4096]{0}', space=vmem, size = 0x1000, scoped, tag = 'input window, operand 2, single buffered']
    #allocation8 [shape = 'u8[4096]{0}', space=vmem, size = 0x1000, scoped, tag = 'input window, operand 3, single buffered']
    #allocation9 [shape = 's32[1]{0}', space=sflag, size = 0x4, scoped, tag = 'scoped memory for tpu_custom_call.1']
    #allocation10 [shape = 'u8[16384]{0}', space=vmem, size = 0x4000, scoped, tag = 'input window, operand 4, single buffered']
    #allocation11 [shape = 'u8[16384]{0}', space=vmem, size = 0x4000, scoped, tag = 'input window, operand 5, single buffered']
    #allocation12 [shape = 's32[1]{0}', space=sflag, size = 0x4, scoped, tag = 'scoped memory for tpu_custom_call.1']
    #allocation13 [shape = 'u8[512]{0}', space=vmem, size = 0x400, scoped, tag = 'input window, operand 6, single buffered']
    #allocation14 [shape = 'u8[512]{0}', space=vmem, size = 0x400, scoped, tag = 'input window, operand 7, single buffered']
    #allocation15 [shape = 's32[1]{0}', space=sflag, size = 0x4, scoped, tag = 'scoped memory for tpu_custom_call.1']
    #allocation16 [shape = 'u8[16384]{0}', space=vmem, size = 0x4000, scoped, tag = 'input window, operand 8, single buffered']
    #allocation17 [shape = 'u8[16384]{0}', space=vmem, size = 0x4000, scoped, tag = 'input window, operand 10, single buffered']
    #allocation18 [shape = 's32[1]{0}', space=sflag, size = 0x4, scoped, tag = 'scoped memory for tpu_custom_call.1']
    #allocation19 [shape = 'u8[4096]{0}', space=vmem, size = 0x1000, scoped, tag = 'output window, operand 0, single buffered']
    %17 = vsyncpa [#allocation3], 0
    %18 = vsyncpa [#allocation6], 0
    %19 = vsyncpa [#allocation9], 0
    %20 = vsyncpa [#allocation12], 0
    %21 = vsyncpa [#allocation15], 0
    %22 = vsyncpa [#allocation18], 0
    %23 = vsyncpa [#allocation4], 0
    // Predicated region
    $region2: #{tpu_custom_call.1} parent=1 // pred_check
      _
    $region3: #{tpu_custom_call.1} parent=1 // pred_check_branch
      %25 = sbr.rel (0) target = $region5
    $region4: #{tpu_custom_call.1} parent=1 // pred_region
      %s27 = ssub.s32 1024, 1024
      %28 = vsyncadd [#allocation3], %s27
      %s29 = sshll.u32 [#allocation2], 4
      %s30 = int_to_ptr.vmem [resolvable:$true] %s29
      %35 = dma.hbm_to_vmem [thread:$0]  %s0, 1024, %s30, [#allocation3], 128, 128, 8
    $region5: #{tpu_custom_call.1} parent=1 // pred_fallthru
      _
    // Predicated region
    $region6: #{tpu_custom_call.1} parent=1 // pred_check
      _
    $region7: #{tpu_custom_call.1} parent=1 // pred_check_branch
      %37 = sbr.rel (0) target = $region9
    $region8: #{tpu_custom_call.1} parent=1 // pred_region
      %s39 = ssub.s32 128, 128
      %40 = vsyncadd [#allocation6], %s39
      %s42 = sshll.u32 [#allocation5], 4
      %s43 = int_to_ptr.vmem [resolvable:$true] %s42
      %45 = dma.hbm_to_vmem [thread:$0]  %s1, 128, %s43, [#allocation6]
    $region9: #{tpu_custom_call.1} parent=1 // pred_fallthru
      _
    // Predicated region
    $region10: #{tpu_custom_call.1} parent=1 // pred_check
      _
    $region11: #{tpu_custom_call.1} parent=1 // pred_check_branch
      %47 = sbr.rel (0) target = $region13
    $region12: #{tpu_custom_call.1} parent=1 // pred_region
      %s49 = ssub.s32 128, 128
      %50 = vsyncadd [#allocation6], %s49
      %s52 = sshll.u32 [#allocation7], 4
      %s53 = int_to_ptr.vmem [resolvable:$true] %s52
      %55 = dma.hbm_to_vmem [thread:$0]  %s2, 128, %s53, [#allocation6]
    $region13: #{tpu_custom_call.1} parent=1 // pred_fallthru
      _
    // Predicated region
    $region14: #{tpu_custom_call.1} parent=1 // pred_check
      _
    $region15: #{tpu_custom_call.1} parent=1 // pred_check_branch
      %57 = sbr.rel (0) target = $region17
    $region16: #{tpu_custom_call.1} parent=1 // pred_region
      %s59 = ssub.s32 128, 128
      %60 = vsyncadd [#allocation9], %s59
      %s62 = sshll.u32 [#allocation8], 4
      %s63 = int_to_ptr.vmem [resolvable:$true] %s62
      %65 = dma.hbm_to_vmem [thread:$0]  %s3, 128, %s63, [#allocation9]
    $region17: #{tpu_custom_call.1} parent=1 // pred_fallthru
      _
    // Predicated region
    $region18: #{tpu_custom_call.1} parent=1 // pred_check
      _
    $region19: #{tpu_custom_call.1} parent=1 // pred_check_branch
      %67 = sbr.rel (0) target = $region21
    $region20: #{tpu_custom_call.1} parent=1 // pred_region
      %s69 = ssub.s32 512, 512
      %70 = vsyncadd [#allocation9], %s69
      %s71 = sshll.u32 [#allocation10], 4
      %s72 = int_to_ptr.vmem [resolvable:$true] %s71
      %77 = dma.hbm_to_vmem [thread:$0]  %s4, 512, %s72, [#allocation9], 128, 128, 8
    $region21: #{tpu_custom_call.1} parent=1 // pred_fallthru
      _
    // Predicated region
    $region22: #{tpu_custom_call.1} parent=1 // pred_check
      _
    $region23: #{tpu_custom_call.1} parent=1 // pred_check_branch
      %79 = sbr.rel (0) target = $region25
    $region24: #{tpu_custom_call.1} parent=1 // pred_region
      %s81 = ssub.s32 512, 512
      %82 = vsyncadd [#allocation12], %s81
      %s83 = sshll.u32 [#allocation11], 4
      %s84 = int_to_ptr.vmem [resolvable:$true] %s83
      %89 = dma.hbm_to_vmem [thread:$0]  %s5, 512, %s84, [#allocation12], 128, 128, 8
    $region25: #{tpu_custom_call.1} parent=1 // pred_fallthru
      _
    // Predicated region
    $region26: #{tpu_custom_call.1} parent=1 // pred_check
      _
    $region27: #{tpu_custom_call.1} parent=1 // pred_check_branch
      %91 = sbr.rel (0) target = $region29
    $region28: #{tpu_custom_call.1} parent=1 // pred_region
      %s93 = ssub.s32 16, 16
      %94 = vsyncadd [#allocation12], %s93
      %s96 = sshll.u32 [#allocation13], 4
      %s97 = int_to_ptr.vmem [resolvable:$true] %s96
      %99 = dma.hbm_to_vmem [thread:$0]  %s6, 16, %s97, [#allocation12]
    $region29: #{tpu_custom_call.1} parent=1 // pred_fallthru
      _
    // Predicated region
    $region30: #{tpu_custom_call.1} parent=1 // pred_check
      _
    $region31: #{tpu_custom_call.1} parent=1 // pred_check_branch
      %101 = sbr.rel (0) target = $region33
    $region32: #{tpu_custom_call.1} parent=1 // pred_region
      %s103 = ssub.s32 16, 16
      %104 = vsyncadd [#allocation15], %s103
      %s106 = sshll.u32 [#allocation14], 4
      %s107 = int_to_ptr.vmem [resolvable:$true] %s106
      %109 = dma.hbm_to_vmem [thread:$0]  %s7, 16, %s107, [#allocation15]
    $region33: #{tpu_custom_call.1} parent=1 // pred_fallthru
      _
    // Predicated region
    $region34: #{tpu_custom_call.1} parent=1 // pred_check
      _
    $region35: #{tpu_custom_call.1} parent=1 // pred_check_branch
      %111 = sbr.rel (0) target = $region37
    $region36: #{tpu_custom_call.1} parent=1 // pred_region
      %s113 = ssub.s32 512, 512
      %114 = vsyncadd [#allocation15], %s113
      %s115 = sshll.u32 [#allocation16], 4
      %s116 = int_to_ptr.vmem [resolvable:$true] %s115
      %121 = dma.hbm_to_vmem [thread:$0]  %s8, 512, %s116, [#allocation15], 128, 128, 8
    $region37: #{tpu_custom_call.1} parent=1 // pred_fallthru
      _
    // Predicated region
    $region38: #{tpu_custom_call.1} parent=1 // pred_check
      _
    $region39: #{tpu_custom_call.1} parent=1 // pred_check_branch
      %123 = sbr.rel (0) target = $region41
    $region40: #{tpu_custom_call.1} parent=1 // pred_region
      _
    $region41: #{tpu_custom_call.1} parent=1 // pred_fallthru
      _
    // Predicated region
    $region42: #{tpu_custom_call.1} parent=1 // pred_check
      _
    $region43: #{tpu_custom_call.1} parent=1 // pred_check_branch
      %125 = sbr.rel (0) target = $region45
    $region44: #{tpu_custom_call.1} parent=1 // pred_region
      %s127 = ssub.s32 512, 512
      %128 = vsyncadd [#allocation18], %s127
      %s129 = sshll.u32 [#allocation17], 4
      %s130 = int_to_ptr.vmem [resolvable:$true] %s129
      %135 = dma.hbm_to_vmem [thread:$0]  %s10, 512, %s130, [#allocation18], 128, 128, 8
    $region45: #{tpu_custom_call.1} parent=1 // pred_fallthru
      _
    // Predicated region
    $region46: #{tpu_custom_call.1} parent=1 // pred_check
      _
    $region47: #{tpu_custom_call.1} parent=1 // pred_check_branch
      %137 = sbr.rel (0) target = $region49
    $region48: #{tpu_custom_call.1} parent=1 // pred_region
      _
    $region49: #{tpu_custom_call.1} parent=1 // pred_fallthru
      _
    // Predicated region
    $region50: #{tpu_custom_call.1} parent=1 // pred_check
      _
    $region51: #{tpu_custom_call.1} parent=1 // pred_check_branch
      %139 = sbr.rel (0) target = $region53
    $region52: #{tpu_custom_call.1} parent=1 // pred_region
      %140 = dma.done [#allocation3], 1024
    $region53: #{tpu_custom_call.1} parent=1 // pred_fallthru
      _
    // Predicated region
    $region54: #{tpu_custom_call.1} parent=1 // pred_check
      _
    $region55: #{tpu_custom_call.1} parent=1 // pred_check_branch
      %142 = sbr.rel (0) target = $region57
    $region56: #{tpu_custom_call.1} parent=1 // pred_region
      %143 = dma.done [#allocation6], 128
    $region57: #{tpu_custom_call.1} parent=1 // pred_fallthru
      _
    // Predicated region
    $region58: #{tpu_custom_call.1} parent=1 // pred_check
      _
    $region59: #{tpu_custom_call.1} parent=1 // pred_check_branch
      %145 = sbr.rel (0) target = $region61
    $region60: #{tpu_custom_call.1} parent=1 // pred_region
      %146 = dma.done [#allocation6], 128
    $region61: #{tpu_custom_call.1} parent=1 // pred_fallthru
      _
    // Predicated region
    $region62: #{tpu_custom_call.1} parent=1 // pred_check
      _
    $region63: #{tpu_custom_call.1} parent=1 // pred_check_branch
      %148 = sbr.rel (0) target = $region65
    $region64: #{tpu_custom_call.1} parent=1 // pred_region
      %149 = dma.done [#allocation9], 128
    $region65: #{tpu_custom_call.1} parent=1 // pred_fallthru
      _
    // Predicated region
    $region66: #{tpu_custom_call.1} parent=1 // pred_check
      _
    $region67: #{tpu_custom_call.1} parent=1 // pred_check_branch
      %151 = sbr.rel (0) target = $region69
    $region68: #{tpu_custom_call.1} parent=1 // pred_region
      %152 = dma.done [#allocation9], 512
    $region69: #{tpu_custom_call.1} parent=1 // pred_fallthru
      _
    // Predicated region
    $region70: #{tpu_custom_call.1} parent=1 // pred_check
      _
    $region71: #{tpu_custom_call.1} parent=1 // pred_check_branch
      %154 = sbr.rel (0) target = $region73
    $region72: #{tpu_custom_call.1} parent=1 // pred_region
      %155 = dma.done [#allocation12], 512
    $region73: #{tpu_custom_call.1} parent=1 // pred_fallthru
      _
    // Predicated region
    $region74: #{tpu_custom_call.1} parent=1 // pred_check
      _
    $region75: #{tpu_custom_call.1} parent=1 // pred_check_branch
      %157 = sbr.rel (0) target = $region77
    $region76: #{tpu_custom_call.1} parent=1 // pred_region
      %158 = dma.done [#allocation12], 16
    $region77: #{tpu_custom_call.1} parent=1 // pred_fallthru
      _
    // Predicated region
    $region78: #{tpu_custom_call.1} parent=1 // pred_check
      _
    $region79: #{tpu_custom_call.1} parent=1 // pred_check_branch
      %160 = sbr.rel (0) target = $region81
    $region80: #{tpu_custom_call.1} parent=1 // pred_region
      %161 = dma.done [#allocation15], 16
    $region81: #{tpu_custom_call.1} parent=1 // pred_fallthru
      _
    // Predicated region
    $region82: #{tpu_custom_call.1} parent=1 // pred_check
      _
    $region83: #{tpu_custom_call.1} parent=1 // pred_check_branch
      %163 = sbr.rel (0) target = $region85
    $region84: #{tpu_custom_call.1} parent=1 // pred_region
      %164 = dma.done [#allocation15], 512
    $region85: #{tpu_custom_call.1} parent=1 // pred_fallthru
      _
    // Predicated region
    $region86: #{tpu_custom_call.1} parent=1 // pred_check
      _
    $region87: #{tpu_custom_call.1} parent=1 // pred_check_branch
      %166 = sbr.rel (0) target = $region89
    $region88: #{tpu_custom_call.1} parent=1 // pred_region
      %167 = dma.done [#allocation18], 512
    $region89: #{tpu_custom_call.1} parent=1 // pred_fallthru
      _
    %v168 = vld [vmem:[#allocation2] sm:$0xff]
    %v169 = vld [vmem:[#allocation2 + $0x8] sm:$0xff]
    %v170 = vld [vmem:[#allocation2 + $0x10] sm:$0xff]
    %v171 = vld [vmem:[#allocation2 + $0x18] sm:$0xff]
    %v172 = vld [vmem:[#allocation2 + $0x20] sm:$0xff]
    %v173 = vld [vmem:[#allocation2 + $0x28] sm:$0xff]
    %v174 = vld [vmem:[#allocation2 + $0x30] sm:$0xff]
    %v175 = vld [vmem:[#allocation2 + $0x38] sm:$0xff]
    %v176 = vld [vmem:[#allocation5] sm:$0xff]
    %v177 = vld [vmem:[#allocation7] sm:$0xff]
    %v178 = vld [vmem:[#allocation8] sm:$0xff]
    %v179 = vld [vmem:[#allocation10] sm:$0xff]
    %v180 = vld [vmem:[#allocation10 + $0x8] sm:$0xff]
    %v181 = vld [vmem:[#allocation10 + $0x10] sm:$0xff]
    %v182 = vld [vmem:[#allocation10 + $0x18] sm:$0xff]
    %vm183 = vcmask 261120
    %v185 = vsel %vm183, %v168, 0
    %v188 = vsel %vm183, %v169, 0
    %v191 = vsel %vm183, %v170, 0
    %v194 = vsel %vm183, %v171, 0
    %v197 = vsel %vm183, %v172, 0
    %v200 = vsel %vm183, %v173, 0
    %v203 = vsel %vm183, %v174, 0
    %v206 = vsel %vm183, %v175, 0
    %208 = vmatprep.subr.mxu0 0.0
    %209 = vmatpush1.msra.mxu0 0.0
    %210 = vmatprep.subr.mxu0 0.0
    %211 = vmatpush1.msra.mxu0 0.0
    %212 = vmatprep.subr.mxu0 0.0
    %213 = vmatpush1.msra.mxu0 0.0
    %214 = vmatprep.subr.mxu0 0.0
    %215 = vmatpush1.msra.mxu0 0.0
    %216 = vmatprep.subr.mxu0 0.0
    %217 = vmatpush1.msra.mxu0 0.0
    %218 = vmatprep.subr.mxu0 0.0
    %219 = vmatpush1.msra.mxu0 0.0
    %220 = vmatprep.subr.mxu0 0.0
    %221 = vmatpush1.msra.mxu0 0.0
    %222 = vmatprep.subr.mxu0 0.0
    %223 = vmatpush1.msra.mxu0 0.0
    %224 = vmatprep.subr.mxu0 0.0
    %225 = vmatpush1.msra.mxu0 0.0
    %226 = vmatprep.subr.mxu0 0.0
    %227 = vmatpush1.msra.mxu0 0.0
    %228 = vmatprep.subr.mxu0 0.0
    %229 = vmatpush1.msra.mxu0 0.0
    %230 = vmatprep.subr.mxu0 0.0
    %231 = vmatpush1.msra.mxu0 0.0
    %232 = vmatprep.subr.mxu0 0.0
    %233 = vmatpush1.msra.mxu0 %v182
    %234 = vmatprep.subr.mxu0 0.0
    %235 = vmatpush1.msra.mxu0 %v181
    %236 = vmatprep.subr.mxu0 0.0
    %237 = vmatpush1.msra.mxu0 %v180
    %238 = vmatprep.subr.mxu0 0.0
    %239 = vmatpush1.msra.mxu0 %v179
    %240 = vmatprep.subr.mxu0 0.0
    %241 = vmatpush2.msra.mxu0 0.0
    %242 = vmatprep.subr.mxu0 0.0
    %243 = vmatpush2.msra.mxu0 0.0
    %244 = vmatprep.subr.mxu0 0.0
    %245 = vmatpush2.msra.mxu0 0.0
    %246 = vmatprep.subr.mxu0 0.0
    %247 = vmatpush2.msra.mxu0 0.0
    %248 = vmatprep.subr.mxu0 0.0
    %249 = vmatpush2.msra.mxu0 0.0
    %250 = vmatprep.subr.mxu0 0.0
    %251 = vmatpush2.msra.mxu0 0.0
    %252 = vmatprep.subr.mxu0 0.0
    %253 = vmatpush2.msra.mxu0 0.0
    %254 = vmatprep.subr.mxu0 0.0
    %255 = vmatpush2.msra.mxu0 0.0
    %256 = vmatprep.subr.mxu0 0.0
    %257 = vmatpush2.msra.mxu0 0.0
    %258 = vmatprep.subr.mxu0 0.0
    %259 = vmatpush2.msra.mxu0 0.0
    %260 = vmatprep.subr.mxu0 0.0
    %261 = vmatpush2.msra.mxu0 0.0
    %262 = vmatprep.subr.mxu0 0.0
    %263 = vmatpush2.msra.mxu0 0.0
    %264 = vmatprep.subr.mxu0 0.0
    %265 = vmatpush2.msra.mxu0 0.0
    %266 = vmatprep.subr.mxu0 0.0
    %267 = vmatpush2.msra.mxu0 0.0
    %268 = vmatprep.subr.mxu0 0.0
    %269 = vmatpush2.msra.mxu0 0.0
    %270 = vmatprep.subr.mxu0 0.0
    %271 = vmatpush2.msra.mxu0 0.0
    %272 = vmatprep.mubr.f32.mxu0 0.0
    %273 = vmatmul.mubr.f32.gmra.mxu0 %v185
    %v274 = vpop.f32.mrf.mxu0
    %v275 = vadd.f32 0.0, %v274
    %v276 = vpop.f32.mrf.mxu0
    %277 = vmatprep.mubr.f32.mxu0 0.0
    %278 = vmatmul.mubr.f32.gmra.mxu0 %v188
    %v279 = vpop.f32.mrf.mxu0
    %v280 = vadd.f32 0.0, %v279
    %v281 = vpop.f32.mrf.mxu0
    %282 = vmatprep.mubr.f32.mxu0 0.0
    %283 = vmatmul.mubr.f32.gmra.mxu0 %v191
    %v284 = vpop.f32.mrf.mxu0
    %v285 = vadd.f32 0.0, %v284
    %v286 = vpop.f32.mrf.mxu0
    %287 = vmatprep.mubr.f32.mxu0 0.0
    %288 = vmatmul.mubr.f32.gmra.mxu0 %v194
    %v289 = vpop.f32.mrf.mxu0
    %v290 = vadd.f32 0.0, %v289
    %v291 = vpop.f32.mrf.mxu0
    %292 = vmatprep.mubr.f32.mxu0 0.0
    %293 = vmatmul.mubr.f32.gmra.mxu0 %v197
    %v294 = vpop.f32.mrf.mxu0
    %v295 = vadd.f32 0.0, %v294
    %v296 = vpop.f32.mrf.mxu0
    %297 = vmatprep.mubr.f32.mxu0 0.0
    %298 = vmatmul.mubr.f32.gmra.mxu0 %v200
    %v299 = vpop.f32.mrf.mxu0
    %v300 = vadd.f32 0.0, %v299
    %v301 = vpop.f32.mrf.mxu0
    %302 = vmatprep.mubr.f32.mxu0 0.0
    %303 = vmatmul.mubr.f32.gmra.mxu0 %v203
    %v304 = vpop.f32.mrf.mxu0
    %v305 = vadd.f32 0.0, %v304
    %v306 = vpop.f32.mrf.mxu0
    %307 = vmatprep.mubr.f32.mxu0 0.0
    %308 = vmatmul.mubr.f32.gmra.mxu0 %v206
    %v309 = vpop.f32.mrf.mxu0
    %v310 = vadd.f32 0.0, %v309
    %v311 = vpop.f32.mrf.mxu0
    %312 = vdwg.mxu0
    %v313 = vld [vmem:[#allocation11] sm:$0xff]
    %v314 = vld [vmem:[#allocation11 + $0x8] sm:$0xff]
    %v315 = vld [vmem:[#allocation11 + $0x10] sm:$0xff]
    %v316 = vld [vmem:[#allocation11 + $0x18] sm:$0xff]
    %v317 = vld [vmem:[#allocation13] sm:$0x1]
    %v319 = vlaneseq
    %v320 = vshrl.u32 %v319, 7
    %v321 = vsub.s32 0, %v320
    %v322 = vrot.slane %v317, %v321
    %v325 = vsel %vm183, %v176, 0
    %327 = vmatprep.subr.mxu0 0.0
    %328 = vmatpush1.msra.mxu0 0.0
    %329 = vmatprep.subr.mxu0 0.0
    %330 = vmatpush1.msra.mxu0 0.0
    %331 = vmatprep.subr.mxu0 0.0
    %332 = vmatpush1.msra.mxu0 0.0
    %333 = vmatprep.subr.mxu0 0.0
    %334 = vmatpush1.msra.mxu0 0.0
    %335 = vmatprep.subr.mxu0 0.0
    %336 = vmatpush1.msra.mxu0 0.0
    %337 = vmatprep.subr.mxu0 0.0
    %338 = vmatpush1.msra.mxu0 0.0
    %339 = vmatprep.subr.mxu0 0.0
    %340 = vmatpush1.msra.mxu0 0.0
    %341 = vmatprep.subr.mxu0 0.0
    %342 = vmatpush1.msra.mxu0 0.0
    %343 = vmatprep.subr.mxu0 0.0
    %344 = vmatpush1.msra.mxu0 0.0
    %345 = vmatprep.subr.mxu0 0.0
    %346 = vmatpush1.msra.mxu0 0.0
    %347 = vmatprep.subr.mxu0 0.0
    %348 = vmatpush1.msra.mxu0 0.0
    %349 = vmatprep.subr.mxu0 0.0
    %350 = vmatpush1.msra.mxu0 0.0
    %351 = vmatprep.subr.mxu0 0.0
    %352 = vmatpush1.msra.mxu0 %v316
    %353 = vmatprep.subr.mxu0 0.0
    %354 = vmatpush1.msra.mxu0 %v315
    %355 = vmatprep.subr.mxu0 0.0
    %356 = vmatpush1.msra.mxu0 %v314
    %357 = vmatprep.subr.mxu0 0.0
    %358 = vmatpush1.msra.mxu0 %v313
    %359 = vmatprep.subr.mxu0 0.0
    %360 = vmatpush2.msra.mxu0 0.0
    %361 = vmatprep.subr.mxu0 0.0
    %362 = vmatpush2.msra.mxu0 0.0
    %363 = vmatprep.subr.mxu0 0.0
    %364 = vmatpush2.msra.mxu0 0.0
    %365 = vmatprep.subr.mxu0 0.0
    %366 = vmatpush2.msra.mxu0 0.0
    %367 = vmatprep.subr.mxu0 0.0
    %368 = vmatpush2.msra.mxu0 0.0
    %369 = vmatprep.subr.mxu0 0.0
    %370 = vmatpush2.msra.mxu0 0.0
    %371 = vmatprep.subr.mxu0 0.0
    %372 = vmatpush2.msra.mxu0 0.0
    %373 = vmatprep.subr.mxu0 0.0
    %374 = vmatpush2.msra.mxu0 0.0
    %375 = vmatprep.subr.mxu0 0.0
    %376 = vmatpush2.msra.mxu0 0.0
    %377 = vmatprep.subr.mxu0 0.0
    %378 = vmatpush2.msra.mxu0 0.0
    %379 = vmatprep.subr.mxu0 0.0
    %380 = vmatpush2.msra.mxu0 0.0
    %381 = vmatprep.subr.mxu0 0.0
    %382 = vmatpush2.msra.mxu0 0.0
    %383 = vmatprep.subr.mxu0 0.0
    %384 = vmatpush2.msra.mxu0 0.0
    %385 = vmatprep.subr.mxu0 0.0
    %386 = vmatpush2.msra.mxu0 0.0
    %387 = vmatprep.subr.mxu0 0.0
    %388 = vmatpush2.msra.mxu0 0.0
    %389 = vmatprep.subr.mxu0 0.0
    %390 = vmatpush2.msra.mxu0 0.0
    %391 = vmatprep.mubr.f32.mxu0 0.0
    %392 = vmatmul.mubr.f32.gmra.mxu0 %v325
    %v393 = vpop.f32.mrf.mxu0
    %v394 = vadd.f32 %v322, %v393
    %v395 = vpop.f32.mrf.mxu0
    %396 = vdwg.mxu0
    %v397 = vadd.f32 %v275, %v394
    %v398 = vadd.f32 %v280, %v394
    %v399 = vadd.f32 %v285, %v394
    %v400 = vadd.f32 %v290, %v394
    %v401 = vadd.f32 %v295, %v394
    %v402 = vadd.f32 %v300, %v394
    %v403 = vadd.f32 %v305, %v394
    %v404 = vadd.f32 %v310, %v394
    %v405 = vtanh.pop %v397
    %v406 = vtanh.pop %v398
    %v407 = vtanh.pop %v399
    %v408 = vtanh.pop %v400
    %v409 = vtanh.pop %v401
    %v410 = vtanh.pop %v402
    %v411 = vtanh.pop %v403
    %v412 = vtanh.pop %v404
    %v413 = vld [vmem:[#allocation14] sm:$0x1]
    %v415 = vlaneseq
    %v416 = vshrl.u32 %v415, 7
    %v417 = vsub.s32 0, %v416
    %v418 = vrot.slane %v413, %v417
    %v420 = vmul.f32 %v405, %v418
    %v421 = vmul.f32 %v406, %v418
    %v422 = vmul.f32 %v407, %v418
    %v423 = vmul.f32 %v408, %v418
    %v424 = vmul.f32 %v409, %v418
    %v425 = vmul.f32 %v410, %v418
    %v426 = vmul.f32 %v411, %v418
    %v427 = vmul.f32 %v412, %v418
    %v428 = vsel %vm183, %v420, 0.0
    %429 = vadd.xlane.f32.xlu0 %v428
    %v430 = vpop.xlane.xlu0 %429
    %v431 = vsel %vm183, %v421, 0.0
    %432 = vadd.xlane.f32.xlu0 %v431
    %v433 = vpop.xlane.xlu0 %432
    %v434 = vsel %vm183, %v422, 0.0
    %435 = vadd.xlane.f32.xlu0 %v434
    %v436 = vpop.xlane.xlu0 %435
    %v437 = vsel %vm183, %v423, 0.0
    %438 = vadd.xlane.f32.xlu0 %v437
    %v439 = vpop.xlane.xlu0 %438
    %v440 = vsel %vm183, %v424, 0.0
    %441 = vadd.xlane.f32.xlu0 %v440
    %v442 = vpop.xlane.xlu0 %441
    %v443 = vsel %vm183, %v425, 0.0
    %444 = vadd.xlane.f32.xlu0 %v443
    %v445 = vpop.xlane.xlu0 %444
    %v446 = vsel %vm183, %v426, 0.0
    %447 = vadd.xlane.f32.xlu0 %v446
    %v448 = vpop.xlane.xlu0 %447
    %v449 = vsel %vm183, %v427, 0.0
    %450 = vadd.xlane.f32.xlu0 %v449
    %v451 = vpop.xlane.xlu0 %450
    %v460 = vlaneseq
    %v461 = vand.u32 %v460, 127
    %v462 = vlaneseq
    %v463 = vshrl.u32 %v462, 7
    %v464 = vsub.s32 %v461, %v463
    %v465 = vrot.slane %v430, %v464
    %v466 = vlaneseq
    %v467 = vshrl.u32 %v466, 7
    %v468 = vsub.s32 %v461, %v467
    %v469 = vrot.slane %v433, %v468
    %v470 = vlaneseq
    %v471 = vshrl.u32 %v470, 7
    %v472 = vsub.s32 %v461, %v471
    %v473 = vrot.slane %v436, %v472
    %v474 = vlaneseq
    %v475 = vshrl.u32 %v474, 7
    %v476 = vsub.s32 %v461, %v475
    %v477 = vrot.slane %v439, %v476
    %v478 = vlaneseq
    %v479 = vshrl.u32 %v478, 7
    %v480 = vsub.s32 %v461, %v479
    %v481 = vrot.slane %v442, %v480
    %v482 = vlaneseq
    %v483 = vshrl.u32 %v482, 7
    %v484 = vsub.s32 %v461, %v483
    %v485 = vrot.slane %v445, %v484
    %v486 = vlaneseq
    %v487 = vshrl.u32 %v486, 7
    %v488 = vsub.s32 %v461, %v487
    %v489 = vrot.slane %v448, %v488
    %v490 = vlaneseq
    %v491 = vshrl.u32 %v490, 7
    %v492 = vsub.s32 %v461, %v491
    %v493 = vrot.slane %v451, %v492
    %vm494 = vcmask 1041409
    %v495 = vsel %vm494, %v469, %v465
    %vm496 = vcmask 1042434
    %v497 = vsel %vm496, %v473, %v495
    %vm498 = vcmask 1043459
    %v499 = vsel %vm498, %v477, %v497
    %vm500 = vcmask 1044484
    %v501 = vsel %vm500, %v481, %v499
    %vm502 = vcmask 1045509
    %v503 = vsel %vm502, %v485, %v501
    %vm504 = vcmask 1046534
    %v505 = vsel %vm504, %v489, %v503
    %vm506 = vcmask 1047559
    %v507 = vsel %vm506, %v493, %v505
    %509 = vxpose.xlu0.b32.start [1/16] %v507, 128
    %510 = vxpose.xlu0.b32.cont [2/16] 0.0, 128
    %511 = vxpose.xlu0.b32.cont [3/16] 0.0, 128
    %512 = vxpose.xlu0.b32.cont [4/16] 0.0, 128
    %513 = vxpose.xlu0.b32.cont [5/16] 0.0, 128
    %514 = vxpose.xlu0.b32.cont [6/16] 0.0, 128
    %515 = vxpose.xlu0.b32.cont [7/16] 0.0, 128
    %516 = vxpose.xlu0.b32.cont [8/16] 0.0, 128
    %517 = vxpose.xlu0.b32.cont [9/16] 0.0, 128
    %518 = vxpose.xlu0.b32.cont [10/16] 0.0, 128
    %519 = vxpose.xlu0.b32.cont [11/16] 0.0, 128
    %520 = vxpose.xlu0.b32.cont [12/16] 0.0, 128
    %521 = vxpose.xlu0.b32.cont [13/16] 0.0, 128
    %522 = vxpose.xlu0.b32.cont [14/16] 0.0, 128
    %523 = vxpose.xlu0.b32.cont [15/16] 0.0, 128
    %524 = vxpose.xlu0.b32.end [16/16] 0.0, 128
    %v525 = vpop.trf.xlu0
    %v526 = vpop.trf.xlu0
    %v527 = vpop.trf.xlu0
    %v528 = vpop.trf.xlu0
    %v529 = vpop.trf.xlu0
    %v530 = vpop.trf.xlu0
    %v531 = vpop.trf.xlu0
    %v532 = vpop.trf.xlu0
    %v533 = vpop.trf.xlu0
    %v534 = vpop.trf.xlu0
    %v535 = vpop.trf.xlu0
    %v536 = vpop.trf.xlu0
    %v537 = vpop.trf.xlu0
    %v538 = vpop.trf.xlu0
    %v539 = vpop.trf.xlu0
    %v540 = vpop.trf.xlu0
    %vm541 = vcmask 64512
    %v542 = vsel %vm541, %v525, -inf
    %543 = vmax.xlane.f32.xlu0 %v542
    %v544 = vpop.xlane.xlu0 %543
    %v545 = vsub.f32 %v525, %v544
    %v546 = vmul.f32 %v545, 1.442695
    %v547 = vpow.pop %v546
    %v548 = vsel %vm541, %v547, 0.0
    %549 = vadd.xlane.f32.xlu0 %v548
    %v550 = vpop.xlane.xlu0 %549
    %v551 = vrcp.pop %v550
    %v552 = vmul.f32 %v547, %v551
    %554 = vset.pattern.permute.xlu0 0
    %555 = vperm.xlu0 %554, %v552
    %v556 = vpop.permute.xlu0 %555
    %v558 = vmul.f32 %v556, %v168
    %v559 = vadd.f32 %v558, 0.0
    %560 = vset.pattern.permute.xlu0 1
    %561 = vperm.xlu0 %560, %v552
    %v562 = vpop.permute.xlu0 %561
    %v564 = vmul.f32 %v562, %v169
    %v565 = vadd.f32 %v559, %v564
    %566 = vset.pattern.permute.xlu0 2
    %567 = vperm.xlu0 %566, %v552
    %v568 = vpop.permute.xlu0 %567
    %v570 = vmul.f32 %v568, %v170
    %v571 = vadd.f32 %v565, %v570
    %572 = vset.pattern.permute.xlu0 3
    %573 = vperm.xlu0 %572, %v552
    %v574 = vpop.permute.xlu0 %573
    %v576 = vmul.f32 %v574, %v171
    %v577 = vadd.f32 %v571, %v576
    %578 = vset.pattern.permute.xlu0 4
    %579 = vperm.xlu0 %578, %v552
    %v580 = vpop.permute.xlu0 %579
    %v582 = vmul.f32 %v580, %v172
    %v583 = vadd.f32 %v577, %v582
    %584 = vset.pattern.permute.xlu0 5
    %585 = vperm.xlu0 %584, %v552
    %v586 = vpop.permute.xlu0 %585
    %v588 = vmul.f32 %v586, %v173
    %v589 = vadd.f32 %v583, %v588
    %590 = vset.pattern.permute.xlu0 6
    %591 = vperm.xlu0 %590, %v552
    %v592 = vpop.permute.xlu0 %591
    %v594 = vmul.f32 %v592, %v174
    %v595 = vadd.f32 %v589, %v594
    %596 = vset.pattern.permute.xlu0 7
    %597 = vperm.xlu0 %596, %v552
    %v598 = vpop.permute.xlu0 %597
    %v600 = vmul.f32 %v598, %v175
    %v601 = vadd.f32 %v595, %v600
    %v602 = vld [vmem:[#allocation16] sm:$0xff]
    %v603 = vld [vmem:[#allocation16 + $0x8] sm:$0xff]
    %v604 = vld [vmem:[#allocation16 + $0x10] sm:$0xff]
    %v605 = vld [vmem:[#allocation16 + $0x18] sm:$0xff]
    %v606 = vld [vmem:[%s9] sm:$0xff]
    %v607 = vld [vmem:[%s9 + $0x8] sm:$0xff]
    %vm608 = vcmask 130048
    %v610 = vsel %vm608, %v178, 0
    %612 = vmatprep.subr.mxu0 0.0
    %613 = vmatpush1.msra.mxu0 0.0
    %614 = vmatprep.subr.mxu0 0.0
    %615 = vmatpush1.msra.mxu0 0.0
    %616 = vmatprep.subr.mxu0 0.0
    %617 = vmatpush1.msra.mxu0 0.0
    %618 = vmatprep.subr.mxu0 0.0
    %619 = vmatpush1.msra.mxu0 0.0
    %620 = vmatprep.subr.mxu0 0.0
    %621 = vmatpush1.msra.mxu0 0.0
    %622 = vmatprep.subr.mxu0 0.0
    %623 = vmatpush1.msra.mxu0 0.0
    %624 = vmatprep.subr.mxu0 0.0
    %625 = vmatpush1.msra.mxu0 0.0
    %626 = vmatprep.subr.mxu0 0.0
    %627 = vmatpush1.msra.mxu0 0.0
    %628 = vmatprep.subr.mxu0 0.0
    %629 = vmatpush1.msra.mxu0 0.0
    %630 = vmatprep.subr.mxu0 0.0
    %631 = vmatpush1.msra.mxu0 0.0
    %632 = vmatprep.subr.mxu0 0.0
    %633 = vmatpush1.msra.mxu0 0.0
    %634 = vmatprep.subr.mxu0 0.0
    %635 = vmatpush1.msra.mxu0 0.0
    %636 = vmatprep.subr.mxu0 0.0
    %637 = vmatpush1.msra.mxu0 0.0
    %638 = vmatprep.subr.mxu0 0.0
    %639 = vmatpush1.msra.mxu0 0.0
    %640 = vmatprep.subr.mxu0 0.0
    %641 = vmatpush1.msra.mxu0 %v607
    %642 = vmatprep.subr.mxu0 0.0
    %643 = vmatpush1.msra.mxu0 %v606
    %644 = vmatprep.subr.mxu0 0.0
    %645 = vmatpush2.msra.mxu0 0.0
    %646 = vmatprep.subr.mxu0 0.0
    %647 = vmatpush2.msra.mxu0 0.0
    %648 = vmatprep.subr.mxu0 0.0
    %649 = vmatpush2.msra.mxu0 0.0
    %650 = vmatprep.subr.mxu0 0.0
    %651 = vmatpush2.msra.mxu0 0.0
    %652 = vmatprep.subr.mxu0 0.0
    %653 = vmatpush2.msra.mxu0 0.0
    %654 = vmatprep.subr.mxu0 0.0
    %655 = vmatpush2.msra.mxu0 0.0
    %656 = vmatprep.subr.mxu0 0.0
    %657 = vmatpush2.msra.mxu0 0.0
    %658 = vmatprep.subr.mxu0 0.0
    %659 = vmatpush2.msra.mxu0 0.0
    %660 = vmatprep.subr.mxu0 0.0
    %661 = vmatpush2.msra.mxu0 0.0
    %662 = vmatprep.subr.mxu0 0.0
    %663 = vmatpush2.msra.mxu0 0.0
    %664 = vmatprep.subr.mxu0 0.0
    %665 = vmatpush2.msra.mxu0 0.0
    %666 = vmatprep.subr.mxu0 0.0
    %667 = vmatpush2.msra.mxu0 0.0
    %668 = vmatprep.subr.mxu0 0.0
    %669 = vmatpush2.msra.mxu0 0.0
    %670 = vmatprep.subr.mxu0 0.0
    %671 = vmatpush2.msra.mxu0 0.0
    %672 = vmatprep.subr.mxu0 0.0
    %673 = vmatpush2.msra.mxu0 0.0
    %674 = vmatprep.subr.mxu0 0.0
    %675 = vmatpush2.msra.mxu0 0.0
    %676 = vmatprep.mubr.f32.mxu0 0.0
    %677 = vmatmul.mubr.f32.gmra.mxu0 %v610
    %v678 = vpop.f32.mrf.mxu0
    %v679 = vadd.f32 0.0, %v678
    %v680 = vpop.f32.mrf.mxu0
    %681 = vdwg.mxu0
    %v683 = vsel %vm183, %v601, 0
    %685 = vmatprep.subr.mxu0 0.0
    %686 = vmatpush1.msra.mxu0 0.0
    %687 = vmatprep.subr.mxu0 0.0
    %688 = vmatpush1.msra.mxu0 0.0
    %689 = vmatprep.subr.mxu0 0.0
    %690 = vmatpush1.msra.mxu0 0.0
    %691 = vmatprep.subr.mxu0 0.0
    %692 = vmatpush1.msra.mxu0 0.0
    %693 = vmatprep.subr.mxu0 0.0
    %694 = vmatpush1.msra.mxu0 0.0
    %695 = vmatprep.subr.mxu0 0.0
    %696 = vmatpush1.msra.mxu0 0.0
    %697 = vmatprep.subr.mxu0 0.0
    %698 = vmatpush1.msra.mxu0 0.0
    %699 = vmatprep.subr.mxu0 0.0
    %700 = vmatpush1.msra.mxu0 0.0
    %701 = vmatprep.subr.mxu0 0.0
    %702 = vmatpush1.msra.mxu0 0.0
    %703 = vmatprep.subr.mxu0 0.0
    %704 = vmatpush1.msra.mxu0 0.0
    %705 = vmatprep.subr.mxu0 0.0
    %706 = vmatpush1.msra.mxu0 0.0
    %707 = vmatprep.subr.mxu0 0.0
    %708 = vmatpush1.msra.mxu0 0.0
    %709 = vmatprep.subr.mxu0 0.0
    %710 = vmatpush1.msra.mxu0 %v605
    %711 = vmatprep.subr.mxu0 0.0
    %712 = vmatpush1.msra.mxu0 %v604
    %713 = vmatprep.subr.mxu0 0.0
    %714 = vmatpush1.msra.mxu0 %v603
    %715 = vmatprep.subr.mxu0 0.0
    %716 = vmatpush1.msra.mxu0 %v602
    %717 = vmatprep.subr.mxu0 0.0
    %718 = vmatpush2.msra.mxu0 0.0
    %719 = vmatprep.subr.mxu0 0.0
    %720 = vmatpush2.msra.mxu0 0.0
    %721 = vmatprep.subr.mxu0 0.0
    %722 = vmatpush2.msra.mxu0 0.0
    %723 = vmatprep.subr.mxu0 0.0
    %724 = vmatpush2.msra.mxu0 0.0
    %725 = vmatprep.subr.mxu0 0.0
    %726 = vmatpush2.msra.mxu0 0.0
    %727 = vmatprep.subr.mxu0 0.0
    %728 = vmatpush2.msra.mxu0 0.0
    %729 = vmatprep.subr.mxu0 0.0
    %730 = vmatpush2.msra.mxu0 0.0
    %731 = vmatprep.subr.mxu0 0.0
    %732 = vmatpush2.msra.mxu0 0.0
    %733 = vmatprep.subr.mxu0 0.0
    %734 = vmatpush2.msra.mxu0 0.0
    %735 = vmatprep.subr.mxu0 0.0
    %736 = vmatpush2.msra.mxu0 0.0
    %737 = vmatprep.subr.mxu0 0.0
    %738 = vmatpush2.msra.mxu0 0.0
    %739 = vmatprep.subr.mxu0 0.0
    %740 = vmatpush2.msra.mxu0 0.0
    %741 = vmatprep.subr.mxu0 0.0
    %742 = vmatpush2.msra.mxu0 0.0
    %743 = vmatprep.subr.mxu0 0.0
    %744 = vmatpush2.msra.mxu0 0.0
    %745 = vmatprep.subr.mxu0 0.0
    %746 = vmatpush2.msra.mxu0 0.0
    %747 = vmatprep.subr.mxu0 0.0
    %748 = vmatpush2.msra.mxu0 0.0
    %749 = vmatprep.mubr.f32.mxu0 0.0
    %750 = vmatmul.mubr.f32.gmra.mxu0 %v683
    %v751 = vpop.f32.mrf.mxu0
    %v752 = vadd.f32 %v679, %v751
    %v753 = vpop.f32.mrf.mxu0
    %754 = vdwg.mxu0
    %v755 = vld [vmem:[#allocation17] sm:$0xff]
    %v756 = vld [vmem:[#allocation17 + $0x8] sm:$0xff]
    %v757 = vld [vmem:[#allocation17 + $0x10] sm:$0xff]
    %v758 = vld [vmem:[#allocation17 + $0x18] sm:$0xff]
    %759 = vmatprep.subr.mxu0 0.0
    %760 = vmatpush1.msra.mxu0 0.0
    %761 = vmatprep.subr.mxu0 0.0
    %762 = vmatpush1.msra.mxu0 0.0
    %763 = vmatprep.subr.mxu0 0.0
    %764 = vmatpush1.msra.mxu0 0.0
    %765 = vmatprep.subr.mxu0 0.0
    %766 = vmatpush1.msra.mxu0 0.0
    %767 = vmatprep.subr.mxu0 0.0
    %768 = vmatpush1.msra.mxu0 0.0
    %769 = vmatprep.subr.mxu0 0.0
    %770 = vmatpush1.msra.mxu0 0.0
    %771 = vmatprep.subr.mxu0 0.0
    %772 = vmatpush1.msra.mxu0 0.0
    %773 = vmatprep.subr.mxu0 0.0
    %774 = vmatpush1.msra.mxu0 0.0
    %775 = vmatprep.subr.mxu0 0.0
    %776 = vmatpush1.msra.mxu0 0.0
    %777 = vmatprep.subr.mxu0 0.0
    %778 = vmatpush1.msra.mxu0 0.0
    %779 = vmatprep.subr.mxu0 0.0
    %780 = vmatpush1.msra.mxu0 0.0
    %781 = vmatprep.subr.mxu0 0.0
    %782 = vmatpush1.msra.mxu0 0.0
    %783 = vmatprep.subr.mxu0 0.0
    %784 = vmatpush1.msra.mxu0 %v758
    %785 = vmatprep.subr.mxu0 0.0
    %786 = vmatpush1.msra.mxu0 %v757
    %787 = vmatprep.subr.mxu0 0.0
    %788 = vmatpush1.msra.mxu0 %v756
    %789 = vmatprep.subr.mxu0 0.0
    %790 = vmatpush1.msra.mxu0 %v755
    %791 = vmatprep.subr.mxu0 0.0
    %792 = vmatpush2.msra.mxu0 0.0
    %793 = vmatprep.subr.mxu0 0.0
    %794 = vmatpush2.msra.mxu0 0.0
    %795 = vmatprep.subr.mxu0 0.0
    %796 = vmatpush2.msra.mxu0 0.0
    %797 = vmatprep.subr.mxu0 0.0
    %798 = vmatpush2.msra.mxu0 0.0
    %799 = vmatprep.subr.mxu0 0.0
    %800 = vmatpush2.msra.mxu0 0.0
    %801 = vmatprep.subr.mxu0 0.0
    %802 = vmatpush2.msra.mxu0 0.0
    %803 = vmatprep.subr.mxu0 0.0
    %804 = vmatpush2.msra.mxu0 0.0
    %805 = vmatprep.subr.mxu0 0.0
    %806 = vmatpush2.msra.mxu0 0.0
    %807 = vmatprep.subr.mxu0 0.0
    %808 = vmatpush2.msra.mxu0 0.0
    %809 = vmatprep.subr.mxu0 0.0
    %810 = vmatpush2.msra.mxu0 0.0
    %811 = vmatprep.subr.mxu0 0.0
    %812 = vmatpush2.msra.mxu0 0.0
    %813 = vmatprep.subr.mxu0 0.0
    %814 = vmatpush2.msra.mxu0 0.0
    %815 = vmatprep.subr.mxu0 0.0
    %816 = vmatpush2.msra.mxu0 0.0
    %817 = vmatprep.subr.mxu0 0.0
    %818 = vmatpush2.msra.mxu0 0.0
    %819 = vmatprep.subr.mxu0 0.0
    %820 = vmatpush2.msra.mxu0 0.0
    %821 = vmatprep.subr.mxu0 0.0
    %822 = vmatpush2.msra.mxu0 0.0
    %823 = vmatprep.mubr.f32.mxu0 0.0
    %824 = vmatmul.mubr.f32.gmra.mxu0 %v325
    %v825 = vpop.f32.mrf.mxu0
    %v826 = vadd.f32 0.0, %v825
    %v827 = vpop.f32.mrf.mxu0
    %828 = vdwg.mxu0
    %v829 = vadd.f32 %v752, %v826
    %v830 = vld [vmem:[%s11] sm:$0x1]
    %v832 = vlaneseq
    %v833 = vshrl.u32 %v832, 7
    %v834 = vsub.s32 0, %v833
    %v835 = vrot.slane %v830, %v834
    %v837 = vadd.f32 %v829, %v835
    %v838 = vxor.u32 %v837, 2147483648
    %v839 = vmul.f32 %v838, 1.442695
    %v840 = vpow.pop %v839
    %v841 = vadd.f32 %v840, 1.0
    %v842 = vrcp.pop %v841
    %v843 = vmul.f32 1.0, %v842
    %v844 = vtanh.pop %v837
    %846 = vrot.lane.b32.xlu0 %v177, 32
    %v847 = vpop.permute.xlu0 %846
    %v849 = vmul.f32 %v843, %v847
    %851 = vrot.lane.b32.xlu0 %v844, 64
    %v852 = vpop.permute.xlu0 %851
    %v854 = vmul.f32 %v843, %v852
    %856 = vrot.lane.b32.xlu0 %v854, 32
    %v857 = vpop.permute.xlu0 %856
    %v859 = vadd.f32 %v849, %v857
    %v860 = vtanh.pop %v859
    %862 = vrot.lane.b32.xlu0 %v860, 64
    %v863 = vpop.permute.xlu0 %862
    %v865 = vmul.f32 %v843, %v863
    %867 = vrot.lane.b32.xlu0 %v865, 32
    %v868 = vpop.permute.xlu0 %867
    %870 = vrot.lane.b32.xlu0 %v552, 64
    %v871 = vpop.permute.xlu0 %870
    %v873 = vsel %vm183, %v868, %v859
    %vm874 = vcmask 523264
    %v875 = vsel %vm874, %v873, %v871
    %vm876 = vcmask 588800
    %v877 = vsel %vm876, %v875, 0.0
    %878 = vst [vmem:[#allocation19] sm:$0xff] %v877
    // Predicated region
    $region90: #{tpu_custom_call.1} parent=1 // pred_check
      _
    $region91: #{tpu_custom_call.1} parent=1 // pred_check_branch
      %880 = sbr.rel (0) target = $region93
    $region92: #{tpu_custom_call.1} parent=1 // pred_region
      %s882 = ssub.s32 128, 128
      %883 = vsyncadd [#allocation4], %s882
      %s885 = sshll.u32 [#allocation19], 4
      %s886 = int_to_ptr.vmem [resolvable:$true] %s885
      %888 = dma.vmem_to_hbm [thread:$0]  %s886, 128, %s12, [#allocation4]
    $region93: #{tpu_custom_call.1} parent=1 // pred_fallthru
      _
    // Predicated region
    $region94: #{tpu_custom_call.1} parent=1 // pred_check
      _
    $region95: #{tpu_custom_call.1} parent=1 // pred_check_branch
      %890 = sbr.rel (0) target = $region97
    $region96: #{tpu_custom_call.1} parent=1 // pred_region
      %891 = dma.done [#allocation4], 128
    $region97: #{tpu_custom_call.1} parent=1 // pred_fallthru
      _
    %892 = vsyncpa [#allocation3], 1
    %893 = vsyncpa [#allocation6], 1
    %894 = vsyncpa [#allocation9], 1
    %895 = vsyncpa [#allocation12], 1
    %896 = vsyncpa [#allocation15], 1
    %897 = vsyncpa [#allocation18], 1
    %898 = vsyncpa [#allocation4], 1

</llo_original>
